<compile_context>
chip_gen: v7x
topology: tpu7x:2x2x1
jax: 0.10.0
libtpu: 0.0.40
codegen_flags: <defaults>
</compile_context>

<pallas_src>
from functools import partial

import jax
import jax.numpy as jnp
from jax.experimental import pallas as pl
from jax.experimental.pallas import tpu as pltpu

_HIDDEN_LAYERS = 4          # hidden2 .. hidden5
_MAX_BATCH_TILE = 2048      # lanes per grid step


def _pick_compute_dtype():
    """bf16 weights/activations on v6e / v7x (bf16-native MXU + VPU), f32 elsewhere."""
    try:
        kind = jax.devices()[0].device_kind.lower()
    except Exception:
        return jnp.float32
    if ("v6" in kind) or ("v7" in kind) or ("7x" in kind):
        return jnp.bfloat16
    return jnp.float32


def _mlp_kernel(x_ref,
                w1_ref, b1_ref,
                wh_ref, bh_ref,
                wo_ref, bo_ref,
                out_ref):
    """Fused MLP forward over one batch tile, transposed layout (features, batch)."""
    f32 = jnp.float32
    act_dtype = wh_ref.dtype                      # bf16 on v6e/v7x, f32 on v5e

    x = x_ref[...].astype(f32)                    # (1, BT), batch on lanes

    # Layer 1: contraction dim K == 1 -> VPU outer product in f32, one cast after.
    h = jnp.maximum(w1_ref[...].astype(f32) * x + b1_ref[...], 0.0)   # (H, BT) f32
    h = h.astype(act_dtype)                       # resident activation stays narrow

    # Hidden layers 2..5 (statically unrolled): (H,H) @ (H,BT) on the MXU with f32
    # accumulation; bias + ReLU in f32, then a single cast back to the act dtype.
    for l in range(_HIDDEN_LAYERS):
        acc = jnp.dot(wh_ref[l], h, preferred_element_type=f32)       # (H, BT) f32
        h = jnp.maximum(acc + bh_ref[l], 0.0).astype(act_dtype)

    # Output layer: lane-dense (1,H) @ (H,BT).
    out = jnp.dot(wo_ref[...], h, preferred_element_type=f32) + bo_ref[...]
    out_ref[...] = out.astype(out_ref.dtype)


def prepare_params(params, compute_dtype=None):
    """One-time conversion of PyTorch-layout params into the kernel-ready layout.

    params: list of 6 (W, b); W of shape (out_features, in_features), b of (out_features,).
    Returns (w1, b1, wh, bh, wo, bo):
      * w1 (H,1), wh (4,H,H), wo (1,H) in `compute_dtype` (MXU LHS of transposed layout),
      * b1 (H,1), bh (4,H,1), bo (1,1) in f32 (broadcast along lanes, feed f32 acc).
    """
    if compute_dtype is None:
        compute_dtype = _pick_compute_dtype()
    (w1, b1), *hidden, (wo, bo) = params
    assert len(hidden) == _HIDDEN_LAYERS, "expected 4 hidden-to-hidden layers"
    w1 = jnp.asarray(w1, compute_dtype)                                   # (H, 1)
    b1 = jnp.asarray(b1, jnp.float32).reshape(-1, 1)                      # (H, 1)
    wh = jnp.stack([jnp.asarray(w, compute_dtype) for w, _ in hidden])    # (4, H, H)
    bh = jnp.stack([jnp.asarray(b, jnp.float32).reshape(-1, 1)
                    for _, b in hidden])                                  # (4, H, 1)
    wo = jnp.asarray(wo, compute_dtype)                                   # (1, H)
    bo = jnp.asarray(bo, jnp.float32).reshape(-1, 1)                      # (1, 1)
    return (w1, b1, wh, bh, wo, bo)


def _default_batch_tile(batch, max_tile=_MAX_BATCH_TILE):
    """Largest tile <= max_tile (multiple of 128); >=2 grid steps when batch allows,
    so v7x's two TensorCores both get work (harmless on v5e/v6e)."""
    padded128 = 128 * ((batch + 127) // 128)
    if padded128 <= 128:
        return 128
    if padded128 <= max_tile:
        half_blocks = (padded128 // 128 + 1) // 2     # ceil-half, in 128-lane units
        return 128 * max(1, half_blocks)
    return max_tile


@partial(jax.jit, static_argnames=("batch_tile",))
def _nn_forward_impl(x, prepared_params, *, batch_tile):
    batch = x.shape[0]
    w1, b1, wh, bh, wo, bo = prepared_params

    # (batch, 1) -> (1, batch): batch on the lane axis (metadata reshape, no copy).
    # No jnp.pad: ragged final block is handled by Pallas (masked store).
    x_t = x.reshape(1, batch)
    grid = (pl.cdiv(batch, batch_tile),)

    def resident(p):  # full-extent block, constant index -> stays resident in VMEM
        if p.ndim == 3:
            return pl.BlockSpec(p.shape, lambda i: (0, 0, 0))
        return pl.BlockSpec(p.shape, lambda i: (0, 0))

    in_specs = [pl.BlockSpec((1, batch_tile), lambda i: (0, i)),
                resident(w1), resident(b1),
                resident(wh), resident(bh),
                resident(wo), resident(bo)]

    out_t = pl.pallas_call(
        _mlp_kernel,
        out_shape=jax.ShapeDtypeStruct((1, batch), jnp.float32),
        grid=grid,
        in_specs=in_specs,
        out_specs=pl.BlockSpec((1, batch_tile), lambda i: (0, i)),
        compiler_params=pltpu.CompilerParams(
            dimension_semantics=("parallel",)),
    )(x_t, w1, b1, wh, bh, wo, bo)

    return out_t.reshape(batch, 1)


def nn_forward(x, prepared_params, batch_tile=None):
    """
    x:               (batch, 1) or (batch,) float32
    prepared_params: output of prepare_params()
    returns          (batch, 1) float32
    """
    x = jnp.asarray(x, jnp.float32)
    if x.ndim == 1:
        x = x[:, None]
    batch = x.shape[0]
    if batch_tile is None:
        batch_tile = _default_batch_tile(batch)
    return _nn_forward_impl(x, prepared_params, batch_tile=batch_tile)


def init_params(hidden_size=32, key=None):
    """Deterministic init mimicking PyTorch's nn.Linear default (U(-1/sqrt(in), 1/sqrt(in)))."""
    if key is None:
        key = jax.random.PRNGKey(0)
    layer_dims = [(1, hidden_size)] + [(hidden_size, hidden_size)] * _HIDDEN_LAYERS \
                 + [(hidden_size, 1)]
    params = []
    for fan_in, fan_out in layer_dims:
        key, kw, kb = jax.random.split(key, 3)
        bound = 1.0 / (fan_in ** 0.5)
        w = jax.random.uniform(kw, (fan_out, fan_in), jnp.float32, -bound, bound)
        b = jax.random.uniform(kb, (fan_out,), jnp.float32, -bound, bound)
        params.append((w, b))
    return params


def reference_forward(x, params):
    """Plain-JAX f32 reference of the PyTorch forward for correctness checking."""
    h = x
    for i, (w, b) in enumerate(params):
        h = h @ w.T + b
        if i < len(params) - 1:
            h = jnp.maximum(h, 0.0)
    return h


if __name__ == "__main__":
    hidden_size = 32
    batch = 8

    key = jax.random.PRNGKey(0)
    key, kx = jax.random.split(key)
    x = jax.random.normal(kx, (batch, 1), jnp.float32)

    params = init_params(hidden_size=hidden_size, key=jax.random.PRNGKey(0))

    compute_dtype = _pick_compute_dtype()
    prepared = prepare_params(params, compute_dtype)   # hoisted one-time layout prep

    out = nn_forward(x, prepared)
    out = jax.block_until_ready(out)

    ref = reference_forward(x, params)
    assert out.shape == (batch, 1)
    if jnp.dtype(compute_dtype) == jnp.dtype(jnp.float32):
        tol = 1e-5
    else:
        tol = 5e-2   # bf16 weight/activation quantization on v6e/v7x
    assert jnp.allclose(out, ref, atol=tol, rtol=tol), (
        f"Pallas output mismatch vs reference (max abs diff "
        f"{float(jnp.max(jnp.abs(out - ref))):.3e})")

    print("KERNEL_OK")
</pallas_src>

<mosaic_0001>
module attributes {stable_mosaic.version = 11 : i64} {
  func.func @_mlp_kernel(%arg0: i32, %arg1: memref<1x128xf32, #tpu.memory_space<vmem>>, %arg2: memref<32x1xf32, #tpu.memory_space<vmem>>, %arg3: memref<32x1xf32, #tpu.memory_space<vmem>>, %arg4: memref<4x32x32xf32, #tpu.memory_space<vmem>>, %arg5: memref<4x32x1xf32, #tpu.memory_space<vmem>>, %arg6: memref<1x32xf32, #tpu.memory_space<vmem>>, %arg7: memref<1x1xf32, #tpu.memory_space<vmem>>, %arg8: memref<1x128xf32, #tpu.memory_space<vmem>>) attributes {dimension_semantics = [#tpu.dimension_semantics<parallel>], iteration_bounds = array<i64: 1>, scalar_prefetch = 0 : i64, scratch_operands = 0 : i64, tpu.core_type = #tpu.core_type<tc>, window_params = [{transform_indices = @transform_0, window_bounds = array<i64: 1, 128>}, {pipeline_mode = #tpu.pipeline_mode<synchronous>, transform_indices = @transform_1, window_bounds = array<i64: 32, 1>}, {pipeline_mode = #tpu.pipeline_mode<synchronous>, transform_indices = @transform_2, window_bounds = array<i64: 32, 1>}, {pipeline_mode = #tpu.pipeline_mode<synchronous>, transform_indices = @transform_3, window_bounds = array<i64: 4, 32, 32>}, {pipeline_mode = #tpu.pipeline_mode<synchronous>, transform_indices = @transform_4, window_bounds = array<i64: 4, 32, 1>}, {pipeline_mode = #tpu.pipeline_mode<synchronous>, transform_indices = @transform_5, window_bounds = array<i64: 1, 32>}, {pipeline_mode = #tpu.pipeline_mode<synchronous>, transform_indices = @transform_6, window_bounds = array<i64: 1, 1>}, {transform_indices = @transform_7, window_bounds = array<i64: 1, 128>}]} {
    %c0 = arith.constant 0 : index
    %c0_0 = arith.constant 0 : index
    %0 = vector.load %arg1[%c0, %c0_0] : memref<1x128xf32, #tpu.memory_space<vmem>>, vector<1x128xf32>
    %c0_1 = arith.constant 0 : index
    %c0_2 = arith.constant 0 : index
    %1 = vector.load %arg2[%c0_1, %c0_2] : memref<32x1xf32, #tpu.memory_space<vmem>>, vector<32x1xf32>
    %2 = vector.broadcast %1 : vector<32x1xf32> to vector<32x128xf32>
    %3 = vector.broadcast %0 : vector<1x128xf32> to vector<32x128xf32>
    %4 = arith.mulf %2, %3 : vector<32x128xf32>
    %c0_3 = arith.constant 0 : index
    %c0_4 = arith.constant 0 : index
    %5 = vector.load %arg3[%c0_3, %c0_4] : memref<32x1xf32, #tpu.memory_space<vmem>>, vector<32x1xf32>
    %6 = vector.broadcast %5 : vector<32x1xf32> to vector<32x128xf32>
    %7 = arith.addf %4, %6 : vector<32x128xf32>
    %cst = arith.constant 0.000000e+00 : f32
    %8 = vector.broadcast %cst : f32 to vector<32x128xf32>
    %9 = arith.maximumf %7, %8 : vector<32x128xf32>
    %c0_5 = arith.constant 0 : index
    %c0_6 = arith.constant 0 : index
    %c0_7 = arith.constant 0 : index
    %10 = vector.load %arg4[%c0_5, %c0_6, %c0_7] : memref<4x32x32xf32, #tpu.memory_space<vmem>>, vector<1x32x32xf32>
    %11 = vector.shape_cast %10 : vector<1x32x32xf32> to vector<32x32xf32>
    %cst_8 = arith.constant dense<0.000000e+00> : vector<32x128xf32>
    %12 = tpu.matmul %11, %9, %cst_8 {dimension_numbers = #tpu.dot_dimension_numbers<[1], [0], [0], [1], [0, 0, 1, 1], [], []>} : vector<32x32xf32>, vector<32x128xf32>, vector<32x128xf32> -> vector<32x128xf32>
    %c0_9 = arith.constant 0 : index
    %c0_10 = arith.constant 0 : index
    %c0_11 = arith.constant 0 : index
    %13 = vector.load %arg5[%c0_9, %c0_10, %c0_11] : memref<4x32x1xf32, #tpu.memory_space<vmem>>, vector<1x32x1xf32>
    %14 = vector.shape_cast %13 : vector<1x32x1xf32> to vector<32x1xf32>
    %15 = vector.broadcast %14 : vector<32x1xf32> to vector<32x128xf32>
    %16 = arith.addf %12, %15 : vector<32x128xf32>
    %cst_12 = arith.constant 0.000000e+00 : f32
    %17 = vector.broadcast %cst_12 : f32 to vector<32x128xf32>
    %18 = arith.maximumf %16, %17 : vector<32x128xf32>
    %c1 = arith.constant 1 : index
    %c0_13 = arith.constant 0 : index
    %c0_14 = arith.constant 0 : index
    %19 = vector.load %arg4[%c1, %c0_13, %c0_14] : memref<4x32x32xf32, #tpu.memory_space<vmem>>, vector<1x32x32xf32>
    %20 = vector.shape_cast %19 : vector<1x32x32xf32> to vector<32x32xf32>
    %cst_15 = arith.constant dense<0.000000e+00> : vector<32x128xf32>
    %21 = tpu.matmul %20, %18, %cst_15 {dimension_numbers = #tpu.dot_dimension_numbers<[1], [0], [0], [1], [0, 0, 1, 1], [], []>} : vector<32x32xf32>, vector<32x128xf32>, vector<32x128xf32> -> vector<32x128xf32>
    %c1_16 = arith.constant 1 : index
    %c0_17 = arith.constant 0 : index
    %c0_18 = arith.constant 0 : index
    %22 = vector.load %arg5[%c1_16, %c0_17, %c0_18] : memref<4x32x1xf32, #tpu.memory_space<vmem>>, vector<1x32x1xf32>
    %23 = vector.shape_cast %22 : vector<1x32x1xf32> to vector<32x1xf32>
    %24 = vector.broadcast %23 : vector<32x1xf32> to vector<32x128xf32>
    %25 = arith.addf %21, %24 : vector<32x128xf32>
    %cst_19 = arith.constant 0.000000e+00 : f32
    %26 = vector.broadcast %cst_19 : f32 to vector<32x128xf32>
    %27 = arith.maximumf %25, %26 : vector<32x128xf32>
    %c2 = arith.constant 2 : index
    %c0_20 = arith.constant 0 : index
    %c0_21 = arith.constant 0 : index
    %28 = vector.load %arg4[%c2, %c0_20, %c0_21] : memref<4x32x32xf32, #tpu.memory_space<vmem>>, vector<1x32x32xf32>
    %29 = vector.shape_cast %28 : vector<1x32x32xf32> to vector<32x32xf32>
    %cst_22 = arith.constant dense<0.000000e+00> : vector<32x128xf32>
    %30 = tpu.matmul %29, %27, %cst_22 {dimension_numbers = #tpu.dot_dimension_numbers<[1], [0], [0], [1], [0, 0, 1, 1], [], []>} : vector<32x32xf32>, vector<32x128xf32>, vector<32x128xf32> -> vector<32x128xf32>
    %c2_23 = arith.constant 2 : index
    %c0_24 = arith.constant 0 : index
    %c0_25 = arith.constant 0 : index
    %31 = vector.load %arg5[%c2_23, %c0_24, %c0_25] : memref<4x32x1xf32, #tpu.memory_space<vmem>>, vector<1x32x1xf32>
    %32 = vector.shape_cast %31 : vector<1x32x1xf32> to vector<32x1xf32>
    %33 = vector.broadcast %32 : vector<32x1xf32> to vector<32x128xf32>
    %34 = arith.addf %30, %33 : vector<32x128xf32>
    %cst_26 = arith.constant 0.000000e+00 : f32
    %35 = vector.broadcast %cst_26 : f32 to vector<32x128xf32>
    %36 = arith.maximumf %34, %35 : vector<32x128xf32>
    %c3 = arith.constant 3 : index
    %c0_27 = arith.constant 0 : index
    %c0_28 = arith.constant 0 : index
    %37 = vector.load %arg4[%c3, %c0_27, %c0_28] : memref<4x32x32xf32, #tpu.memory_space<vmem>>, vector<1x32x32xf32>
    %38 = vector.shape_cast %37 : vector<1x32x32xf32> to vector<32x32xf32>
    %cst_29 = arith.constant dense<0.000000e+00> : vector<32x128xf32>
    %39 = tpu.matmul %38, %36, %cst_29 {dimension_numbers = #tpu.dot_dimension_numbers<[1], [0], [0], [1], [0, 0, 1, 1], [], []>} : vector<32x32xf32>, vector<32x128xf32>, vector<32x128xf32> -> vector<32x128xf32>
    %c3_30 = arith.constant 3 : index
    %c0_31 = arith.constant 0 : index
    %c0_32 = arith.constant 0 : index
    %40 = vector.load %arg5[%c3_30, %c0_31, %c0_32] : memref<4x32x1xf32, #tpu.memory_space<vmem>>, vector<1x32x1xf32>
    %41 = vector.shape_cast %40 : vector<1x32x1xf32> to vector<32x1xf32>
    %42 = vector.broadcast %41 : vector<32x1xf32> to vector<32x128xf32>
    %43 = arith.addf %39, %42 : vector<32x128xf32>
    %cst_33 = arith.constant 0.000000e+00 : f32
    %44 = vector.broadcast %cst_33 : f32 to vector<32x128xf32>
    %45 = arith.maximumf %43, %44 : vector<32x128xf32>
    %c0_34 = arith.constant 0 : index
    %c0_35 = arith.constant 0 : index
    %46 = vector.load %arg6[%c0_34, %c0_35] : memref<1x32xf32, #tpu.memory_space<vmem>>, vector<1x32xf32>
    %cst_36 = arith.constant dense<0.000000e+00> : vector<1x128xf32>
    %47 = tpu.matmul %46, %45, %cst_36 {dimension_numbers = #tpu.dot_dimension_numbers<[1], [0], [0], [1], [0, 0, 1, 1], [], []>} : vector<1x32xf32>, vector<32x128xf32>, vector<1x128xf32> -> vector<1x128xf32>
    %c0_37 = arith.constant 0 : index
    %c0_38 = arith.constant 0 : index
    %48 = vector.load %arg7[%c0_37, %c0_38] : memref<1x1xf32, #tpu.memory_space<vmem>>, vector<1x1xf32>
    %49 = vector.broadcast %48 : vector<1x1xf32> to vector<1x128xf32>
    %50 = arith.addf %47, %49 : vector<1x128xf32>
    %c0_39 = arith.constant 0 : index
    %c0_40 = arith.constant 0 : index
    %51 = vector.load %arg8[%c0_39, %c0_40] : memref<1x128xf32, #tpu.memory_space<vmem>>, vector<1x128xf32>
    tpu.vector_store %arg8[%c0_39, %c0_40], %50 {strides = array<i32>} : memref<1x128xf32, #tpu.memory_space<vmem>>, vector<1x128xf32>,
    return
  }
  func.func @transform_0(%arg0: i32) -> (i32, i32) {
    %c0_i32 = arith.constant 0 : i32
    %c0_i32_0 = arith.constant 0 : i32
    return %c0_i32, %arg0 : i32, i32
  }
  func.func @transform_1(%arg0: i32) -> (i32, i32) {
    %c0_i32 = arith.constant 0 : i32
    %c0_i32_0 = arith.constant 0 : i32
    %c0_i32_1 = arith.constant 0 : i32
    return %c0_i32, %c0_i32_0 : i32, i32
  }
  func.func @transform_2(%arg0: i32) -> (i32, i32) {
    %c0_i32 = arith.constant 0 : i32
    %c0_i32_0 = arith.constant 0 : i32
    %c0_i32_1 = arith.constant 0 : i32
    return %c0_i32, %c0_i32_0 : i32, i32
  }
  func.func @transform_3(%arg0: i32) -> (i32, i32, i32) {
    %c0_i32 = arith.constant 0 : i32
    %c0_i32_0 = arith.constant 0 : i32
    %c0_i32_1 = arith.constant 0 : i32
    %c0_i32_2 = arith.constant 0 : i32
    return %c0_i32, %c0_i32_0, %c0_i32_1 : i32, i32, i32
  }
  func.func @transform_4(%arg0: i32) -> (i32, i32, i32) {
    %c0_i32 = arith.constant 0 : i32
    %c0_i32_0 = arith.constant 0 : i32
    %c0_i32_1 = arith.constant 0 : i32
    %c0_i32_2 = arith.constant 0 : i32
    return %c0_i32, %c0_i32_0, %c0_i32_1 : i32, i32, i32
  }
  func.func @transform_5(%arg0: i32) -> (i32, i32) {
    %c0_i32 = arith.constant 0 : i32
    %c0_i32_0 = arith.constant 0 : i32
    %c0_i32_1 = arith.constant 0 : i32
    return %c0_i32, %c0_i32_0 : i32, i32
  }
  func.func @transform_6(%arg0: i32) -> (i32, i32) {
    %c0_i32 = arith.constant 0 : i32
    %c0_i32_0 = arith.constant 0 : i32
    %c0_i32_1 = arith.constant 0 : i32
    return %c0_i32, %c0_i32_0 : i32, i32
  }
  func.func @transform_7(%arg0: i32) -> (i32, i32) {
    %c0_i32 = arith.constant 0 : i32
    %c0_i32_0 = arith.constant 0 : i32
    return %c0_i32, %arg0 : i32, i32
  }
}

</mosaic_0001>

<llo_original>
// kernel: _nn_forward_impl.1
$region0: #{_nn_forward_impl.1}
  #allocation0 [shape = 'u32[]', space=smem, size = 0x4, offset = 0x4, fixed_abs, tag = 'smem constant byte address 0x4 - core index']
  #allocation1 [shape = 'u32[144,128]{1,0:T(1,128)}', space=vmem, size = 0x12000, scoped, tag = 'internal scratch']
  #allocation2 [shape = 'f32[1,1]{1,0:T(1,128)S(1)}', space=vmem, size = 0x200, scoped, tag = 'scoped memory for _nn_forward_impl.1']
  %s0 = inlined_call_operand.vmem [shape: f32[1,8], index: 0, kind: input, shape index: {}]
  %s1 = inlined_call_operand.vmem [shape: f32[32,1], index: 1, kind: input, shape index: {}]
  %s2 = inlined_call_operand.vmem [shape: f32[32,1], index: 2, kind: input, shape index: {}]
  %s3 = inlined_call_operand.vmem [shape: f32[4,32,32], index: 3, kind: input, shape index: {}]
  %s4 = inlined_call_operand.vmem [shape: f32[4,32,1], index: 4, kind: input, shape index: {}]
  %s5 = inlined_call_operand.vmem [shape: f32[1,32], index: 5, kind: input, shape index: {}]
  %s6 = inlined_call_operand.<no memory space> [shape: f32[1,1], index: 6, kind: input, shape index: {}]
  %s7 = inlined_call_operand.hbm [shape: f32[1,8], index: 7, kind: output, shape index: {}]
  %s8 = sld [smem:[#allocation0]]
  $region38: #{_nn_forward_impl.1} parent=0
    _
  %s10 = ssub.s32 1, %s8
  %s11 = scalar_select 0, %s10, %s8
  %v12 = vstv %s6
  %13 = vst [vmem:[#allocation2] sm:$0x1] %v12
  $region1: #{_nn_forward_impl.1} parent=0
    #allocation3 [shape = 'u8[512]{0}', space=vmem, size = 0x400, scoped, tag = 'output window, operand 0, single buffered']
    #allocation4 [shape = 's32[1]{0}', space=sflag, size = 0x4, scoped, tag = 'scoped memory for _nn_forward_impl.1']
    %14 = vsyncpa [#allocation4], 0
    // Predicated region
    $region2: #{_nn_forward_impl.1} parent=1 // pred_check
      _
    $region3: #{_nn_forward_impl.1} parent=1 // pred_check_branch
      %16 = sbr.rel (0) target = $region5
    $region4: #{_nn_forward_impl.1} parent=1 // pred_region
      _
    $region5: #{_nn_forward_impl.1} parent=1 // pred_fallthru
      _
    // Predicated region
    $region6: #{_nn_forward_impl.1} parent=1 // pred_check
      _
    $region7: #{_nn_forward_impl.1} parent=1 // pred_check_branch
      %18 = sbr.rel (0) target = $region9
    $region8: #{_nn_forward_impl.1} parent=1 // pred_region
      _
    $region9: #{_nn_forward_impl.1} parent=1 // pred_fallthru
      _
    // Predicated region
    $region10: #{_nn_forward_impl.1} parent=1 // pred_check
      _
    $region11: #{_nn_forward_impl.1} parent=1 // pred_check_branch
      %20 = sbr.rel (0) target = $region13
    $region12: #{_nn_forward_impl.1} parent=1 // pred_region
      _
    $region13: #{_nn_forward_impl.1} parent=1 // pred_fallthru
      _
    // Predicated region
    $region14: #{_nn_forward_impl.1} parent=1 // pred_check
      _
    $region15: #{_nn_forward_impl.1} parent=1 // pred_check_branch
      %22 = sbr.rel (0) target = $region17
    $region16: #{_nn_forward_impl.1} parent=1 // pred_region
      _
    $region17: #{_nn_forward_impl.1} parent=1 // pred_fallthru
      _
    // Predicated region
    $region18: #{_nn_forward_impl.1} parent=1 // pred_check
      _
    $region19: #{_nn_forward_impl.1} parent=1 // pred_check_branch
      %24 = sbr.rel (0) target = $region21
    $region20: #{_nn_forward_impl.1} parent=1 // pred_region
      _
    $region21: #{_nn_forward_impl.1} parent=1 // pred_fallthru
      _
    // Predicated region
    $region22: #{_nn_forward_impl.1} parent=1 // pred_check
      _
    $region23: #{_nn_forward_impl.1} parent=1 // pred_check_branch
      %26 = sbr.rel (0) target = $region25
    $region24: #{_nn_forward_impl.1} parent=1 // pred_region
      _
    $region25: #{_nn_forward_impl.1} parent=1 // pred_fallthru
      _
    // Predicated region
    $region26: #{_nn_forward_impl.1} parent=1 // pred_check
      _
    $region27: #{_nn_forward_impl.1} parent=1 // pred_check_branch
      %28 = sbr.rel (0) target = $region29
    $region28: #{_nn_forward_impl.1} parent=1 // pred_region
      _
    $region29: #{_nn_forward_impl.1} parent=1 // pred_fallthru
      _
    %v29 = vld [vmem:[%s0] sm:$0x1]
    %v30 = vld [vmem:[%s1] sm:$0xff]
    %v31 = vld [vmem:[%s1 + $0x8] sm:$0xff]
    %v32 = vld [vmem:[%s1 + $0x10] sm:$0xff]
    %v33 = vld [vmem:[%s1 + $0x18] sm:$0xff]
    %35 = vset.pattern.permute.xlu0 0
    %36 = vperm.xlu0 %35, %v30
    %v37 = vpop.permute.xlu0 %36
    %40 = vset.pattern.permute.xlu0 0
    %41 = vperm.xlu0 %40, %v31
    %v42 = vpop.permute.xlu0 %41
    %45 = vset.pattern.permute.xlu0 0
    %46 = vperm.xlu0 %45, %v32
    %v47 = vpop.permute.xlu0 %46
    %50 = vset.pattern.permute.xlu0 0
    %51 = vperm.xlu0 %50, %v33
    %v52 = vpop.permute.xlu0 %51
    %v55 = vlaneseq
    %v56 = vshrl.u32 %v55, 7
    %v57 = vsub.s32 0, %v56
    %v58 = vrot.slane %v29, %v57
    %v60 = vmul.f32 %v37, %v58
    %v61 = vmul.f32 %v42, %v58
    %v62 = vmul.f32 %v47, %v58
    %v63 = vmul.f32 %v52, %v58
    %v64 = vld [vmem:[%s2] sm:$0xff]
    %v65 = vld [vmem:[%s2 + $0x8] sm:$0xff]
    %v66 = vld [vmem:[%s2 + $0x10] sm:$0xff]
    %v67 = vld [vmem:[%s2 + $0x18] sm:$0xff]
    %69 = vset.pattern.permute.xlu0 0
    %70 = vperm.xlu0 %69, %v64
    %v71 = vpop.permute.xlu0 %70
    %74 = vset.pattern.permute.xlu0 0
    %75 = vperm.xlu0 %74, %v65
    %v76 = vpop.permute.xlu0 %75
    %79 = vset.pattern.permute.xlu0 0
    %80 = vperm.xlu0 %79, %v66
    %v81 = vpop.permute.xlu0 %80
    %84 = vset.pattern.permute.xlu0 0
    %85 = vperm.xlu0 %84, %v67
    %v86 = vpop.permute.xlu0 %85
    %v88 = vadd.f32 %v60, %v71
    %v89 = vadd.f32 %v61, %v76
    %v90 = vadd.f32 %v62, %v81
    %v91 = vadd.f32 %v63, %v86
    %v92 = vmax.f32 %v88, 0.0
    %v93 = vmax.f32 %v89, 0.0
    %v94 = vmax.f32 %v90, 0.0
    %v95 = vmax.f32 %v91, 0.0
    %v96 = vld [vmem:[%s3] sm:$0xff]
    %v97 = vld [vmem:[%s3 + $0x8] sm:$0xff]
    %v98 = vld [vmem:[%s3 + $0x10] sm:$0xff]
    %v99 = vld [vmem:[%s3 + $0x18] sm:$0xff]
    %v100 = vld [vmem:[%s4] sm:$0xff]
    %v101 = vld [vmem:[%s4 + $0x8] sm:$0xff]
    %v102 = vld [vmem:[%s4 + $0x10] sm:$0xff]
    %v103 = vld [vmem:[%s4 + $0x18] sm:$0xff]
    %105 = vset.pattern.permute.xlu0 0
    %106 = vperm.xlu0 %105, %v100
    %v107 = vpop.permute.xlu0 %106
    %110 = vset.pattern.permute.xlu0 0
    %111 = vperm.xlu0 %110, %v101
    %v112 = vpop.permute.xlu0 %111
    %115 = vset.pattern.permute.xlu0 0
    %116 = vperm.xlu0 %115, %v102
    %v117 = vpop.permute.xlu0 %116
    %120 = vset.pattern.permute.xlu0 0
    %121 = vperm.xlu0 %120, %v103
    %v122 = vpop.permute.xlu0 %121
    %vm124 = vcmask 261120
    %v126 = vsel %vm124, %v96, 0
    %v129 = vsel %vm124, %v97, 0
    %v132 = vsel %vm124, %v98, 0
    %v135 = vsel %vm124, %v99, 0
    %137 = vmatprep.subr.mxu0 0.0
    %138 = vmatpush1.msra.mxu0 %v92
    %139 = vmatprep.subr.mxu0 0.0
    %140 = vmatpush1.msra.mxu0 %v93
    %141 = vmatprep.subr.mxu0 0.0
    %142 = vmatpush1.msra.mxu0 %v94
    %143 = vmatprep.subr.mxu0 0.0
    %144 = vmatpush1.msra.mxu0 %v95
    %145 = vmatprep.subr.mxu0 0.0
    %146 = vmatpush1.msra.mxu0 0.0
    %147 = vmatprep.subr.mxu0 0.0
    %148 = vmatpush1.msra.mxu0 0.0
    %149 = vmatprep.subr.mxu0 0.0
    %150 = vmatpush1.msra.mxu0 0.0
    %151 = vmatprep.subr.mxu0 0.0
    %152 = vmatpush1.msra.mxu0 0.0
    %153 = vmatprep.subr.mxu0 0.0
    %154 = vmatpush1.msra.mxu0 0.0
    %155 = vmatprep.subr.mxu0 0.0
    %156 = vmatpush1.msra.mxu0 0.0
    %157 = vmatprep.subr.mxu0 0.0
    %158 = vmatpush1.msra.mxu0 0.0
    %159 = vmatprep.subr.mxu0 0.0
    %160 = vmatpush1.msra.mxu0 0.0
    %161 = vmatprep.subr.mxu0 0.0
    %162 = vmatpush1.msra.mxu0 0.0
    %163 = vmatprep.subr.mxu0 0.0
    %164 = vmatpush1.msra.mxu0 0.0
    %165 = vmatprep.subr.mxu0 0.0
    %166 = vmatpush1.msra.mxu0 0.0
    %167 = vmatprep.subr.mxu0 0.0
    %168 = vmatpush1.msra.mxu0 0.0
    %169 = vmatprep.subr.mxu0 0.0
    %170 = vmatpush1.msra.mxu0 0.0
    %171 = vmatprep.subr.mxu0 0.0
    %172 = vmatpush1.msra.mxu0 0.0
    %173 = vmatprep.subr.mxu0 0.0
    %174 = vmatpush1.msra.mxu0 0.0
    %175 = vmatprep.subr.mxu0 0.0
    %176 = vmatpush1.msra.mxu0 0.0
    %177 = vmatprep.subr.mxu0 0.0
    %178 = vmatpush1.msra.mxu0 0.0
    %179 = vmatprep.subr.mxu0 0.0
    %180 = vmatpush1.msra.mxu0 0.0
    %181 = vmatprep.subr.mxu0 0.0
    %182 = vmatpush1.msra.mxu0 0.0
    %183 = vmatprep.subr.mxu0 0.0
    %184 = vmatpush1.msra.mxu0 0.0
    %185 = vmatprep.subr.mxu0 0.0
    %186 = vmatpush1.msra.mxu0 0.0
    %187 = vmatprep.subr.mxu0 0.0
    %188 = vmatpush1.msra.mxu0 0.0
    %189 = vmatprep.subr.mxu0 0.0
    %190 = vmatpush1.msra.mxu0 0.0
    %191 = vmatprep.subr.mxu0 0.0
    %192 = vmatpush1.msra.mxu0 0.0
    %193 = vmatprep.subr.mxu0 0.0
    %194 = vmatpush1.msra.mxu0 0.0
    %195 = vmatprep.subr.mxu0 0.0
    %196 = vmatpush1.msra.mxu0 0.0
    %197 = vmatprep.subr.mxu0 0.0
    %198 = vmatpush1.msra.mxu0 0.0
    %199 = vmatprep.subr.mxu0 0.0
    %200 = vmatpush1.msra.mxu0 0.0
    %201 = vmatprep.mubr.f32.mxu0 0.0
    %202 = vmatmul.mubr.f32.gmra.mrb[0].mxu0 %v126
    %v203 = vpop.f32.mrb[0].mxu0
    %v204 = vadd.f32 %v107, %v203
    %v205 = vpop.f32.mrb[0].mxu0
    %206 = vmatprep.mubr.f32.mxu0 0.0
    %207 = vmatmul.mubr.f32.gmra.mrb[0].mxu0 %v129
    %v208 = vpop.f32.mrb[0].mxu0
    %v209 = vadd.f32 %v112, %v208
    %v210 = vpop.f32.mrb[0].mxu0
    %211 = vmatprep.mubr.f32.mxu0 0.0
    %212 = vmatmul.mubr.f32.gmra.mrb[0].mxu0 %v132
    %v213 = vpop.f32.mrb[0].mxu0
    %v214 = vadd.f32 %v117, %v213
    %v215 = vpop.f32.mrb[0].mxu0
    %216 = vmatprep.mubr.f32.mxu0 0.0
    %217 = vmatmul.mubr.f32.gmra.mrb[0].mxu0 %v135
    %v218 = vpop.f32.mrb[0].mxu0
    %v219 = vadd.f32 %v122, %v218
    %v220 = vpop.f32.mrb[0].mxu0
    %221 = vdwg.mxu0
    %v222 = vmax.f32 %v204, 0.0
    %v223 = vmax.f32 %v209, 0.0
    %v224 = vmax.f32 %v214, 0.0
    %v225 = vmax.f32 %v219, 0.0
    %s226 = scalar_lea.vmem %s3, 32
    %v227 = vld [vmem:[%s226] sm:$0xff]
    %v228 = vld [vmem:[%s226 + $0x8] sm:$0xff]
    %v229 = vld [vmem:[%s226 + $0x10] sm:$0xff]
    %v230 = vld [vmem:[%s226 + $0x18] sm:$0xff]
    %s231 = scalar_lea.vmem %s4, 32
    %v232 = vld [vmem:[%s231] sm:$0xff]
    %v233 = vld [vmem:[%s231 + $0x8] sm:$0xff]
    %v234 = vld [vmem:[%s231 + $0x10] sm:$0xff]
    %v235 = vld [vmem:[%s231 + $0x18] sm:$0xff]
    %237 = vset.pattern.permute.xlu0 0
    %238 = vperm.xlu0 %237, %v232
    %v239 = vpop.permute.xlu0 %238
    %242 = vset.pattern.permute.xlu0 0
    %243 = vperm.xlu0 %242, %v233
    %v244 = vpop.permute.xlu0 %243
    %247 = vset.pattern.permute.xlu0 0
    %248 = vperm.xlu0 %247, %v234
    %v249 = vpop.permute.xlu0 %248
    %252 = vset.pattern.permute.xlu0 0
    %253 = vperm.xlu0 %252, %v235
    %v254 = vpop.permute.xlu0 %253
    %v257 = vsel %vm124, %v227, 0
    %v260 = vsel %vm124, %v228, 0
    %v263 = vsel %vm124, %v229, 0
    %v266 = vsel %vm124, %v230, 0
    %268 = vmatprep.subr.mxu0 0.0
    %269 = vmatpush1.msra.mxu0 %v222
    %270 = vmatprep.subr.mxu0 0.0
    %271 = vmatpush1.msra.mxu0 %v223
    %272 = vmatprep.subr.mxu0 0.0
    %273 = vmatpush1.msra.mxu0 %v224
    %274 = vmatprep.subr.mxu0 0.0
    %275 = vmatpush1.msra.mxu0 %v225
    %276 = vmatprep.subr.mxu0 0.0
    %277 = vmatpush1.msra.mxu0 0.0
    %278 = vmatprep.subr.mxu0 0.0
    %279 = vmatpush1.msra.mxu0 0.0
    %280 = vmatprep.subr.mxu0 0.0
    %281 = vmatpush1.msra.mxu0 0.0
    %282 = vmatprep.subr.mxu0 0.0
    %283 = vmatpush1.msra.mxu0 0.0
    %284 = vmatprep.subr.mxu0 0.0
    %285 = vmatpush1.msra.mxu0 0.0
    %286 = vmatprep.subr.mxu0 0.0
    %287 = vmatpush1.msra.mxu0 0.0
    %288 = vmatprep.subr.mxu0 0.0
    %289 = vmatpush1.msra.mxu0 0.0
    %290 = vmatprep.subr.mxu0 0.0
    %291 = vmatpush1.msra.mxu0 0.0
    %292 = vmatprep.subr.mxu0 0.0
    %293 = vmatpush1.msra.mxu0 0.0
    %294 = vmatprep.subr.mxu0 0.0
    %295 = vmatpush1.msra.mxu0 0.0
    %296 = vmatprep.subr.mxu0 0.0
    %297 = vmatpush1.msra.mxu0 0.0
    %298 = vmatprep.subr.mxu0 0.0
    %299 = vmatpush1.msra.mxu0 0.0
    %300 = vmatprep.subr.mxu0 0.0
    %301 = vmatpush1.msra.mxu0 0.0
    %302 = vmatprep.subr.mxu0 0.0
    %303 = vmatpush1.msra.mxu0 0.0
    %304 = vmatprep.subr.mxu0 0.0
    %305 = vmatpush1.msra.mxu0 0.0
    %306 = vmatprep.subr.mxu0 0.0
    %307 = vmatpush1.msra.mxu0 0.0
    %308 = vmatprep.subr.mxu0 0.0
    %309 = vmatpush1.msra.mxu0 0.0
    %310 = vmatprep.subr.mxu0 0.0
    %311 = vmatpush1.msra.mxu0 0.0
    %312 = vmatprep.subr.mxu0 0.0
    %313 = vmatpush1.msra.mxu0 0.0
    %314 = vmatprep.subr.mxu0 0.0
    %315 = vmatpush1.msra.mxu0 0.0
    %316 = vmatprep.subr.mxu0 0.0
    %317 = vmatpush1.msra.mxu0 0.0
    %318 = vmatprep.subr.mxu0 0.0
    %319 = vmatpush1.msra.mxu0 0.0
    %320 = vmatprep.subr.mxu0 0.0
    %321 = vmatpush1.msra.mxu0 0.0
    %322 = vmatprep.subr.mxu0 0.0
    %323 = vmatpush1.msra.mxu0 0.0
    %324 = vmatprep.subr.mxu0 0.0
    %325 = vmatpush1.msra.mxu0 0.0
    %326 = vmatprep.subr.mxu0 0.0
    %327 = vmatpush1.msra.mxu0 0.0
    %328 = vmatprep.subr.mxu0 0.0
    %329 = vmatpush1.msra.mxu0 0.0
    %330 = vmatprep.subr.mxu0 0.0
    %331 = vmatpush1.msra.mxu0 0.0
    %332 = vmatprep.mubr.f32.mxu0 0.0
    %333 = vmatmul.mubr.f32.gmra.mrb[0].mxu0 %v257
    %v334 = vpop.f32.mrb[0].mxu0
    %v335 = vadd.f32 %v239, %v334
    %v336 = vpop.f32.mrb[0].mxu0
    %337 = vmatprep.mubr.f32.mxu0 0.0
    %338 = vmatmul.mubr.f32.gmra.mrb[0].mxu0 %v260
    %v339 = vpop.f32.mrb[0].mxu0
    %v340 = vadd.f32 %v244, %v339
    %v341 = vpop.f32.mrb[0].mxu0
    %342 = vmatprep.mubr.f32.mxu0 0.0
    %343 = vmatmul.mubr.f32.gmra.mrb[0].mxu0 %v263
    %v344 = vpop.f32.mrb[0].mxu0
    %v345 = vadd.f32 %v249, %v344
    %v346 = vpop.f32.mrb[0].mxu0
    %347 = vmatprep.mubr.f32.mxu0 0.0
    %348 = vmatmul.mubr.f32.gmra.mrb[0].mxu0 %v266
    %v349 = vpop.f32.mrb[0].mxu0
    %v350 = vadd.f32 %v254, %v349
    %v351 = vpop.f32.mrb[0].mxu0
    %352 = vdwg.mxu0
    %v353 = vmax.f32 %v335, 0.0
    %v354 = vmax.f32 %v340, 0.0
    %v355 = vmax.f32 %v345, 0.0
    %v356 = vmax.f32 %v350, 0.0
    %s357 = scalar_lea.vmem %s3, 64
    %v358 = vld [vmem:[%s357] sm:$0xff]
    %v359 = vld [vmem:[%s357 + $0x8] sm:$0xff]
    %v360 = vld [vmem:[%s357 + $0x10] sm:$0xff]
    %v361 = vld [vmem:[%s357 + $0x18] sm:$0xff]
    %s362 = scalar_lea.vmem %s4, 64
    %v363 = vld [vmem:[%s362] sm:$0xff]
    %v364 = vld [vmem:[%s362 + $0x8] sm:$0xff]
    %v365 = vld [vmem:[%s362 + $0x10] sm:$0xff]
    %v366 = vld [vmem:[%s362 + $0x18] sm:$0xff]
    %368 = vset.pattern.permute.xlu0 0
    %369 = vperm.xlu0 %368, %v363
    %v370 = vpop.permute.xlu0 %369
    %373 = vset.pattern.permute.xlu0 0
    %374 = vperm.xlu0 %373, %v364
    %v375 = vpop.permute.xlu0 %374
    %378 = vset.pattern.permute.xlu0 0
    %379 = vperm.xlu0 %378, %v365
    %v380 = vpop.permute.xlu0 %379
    %383 = vset.pattern.permute.xlu0 0
    %384 = vperm.xlu0 %383, %v366
    %v385 = vpop.permute.xlu0 %384
    %v388 = vsel %vm124, %v358, 0
    %v391 = vsel %vm124, %v359, 0
    %v394 = vsel %vm124, %v360, 0
    %v397 = vsel %vm124, %v361, 0
    %399 = vmatprep.subr.mxu0 0.0
    %400 = vmatpush1.msra.mxu0 %v353
    %401 = vmatprep.subr.mxu0 0.0
    %402 = vmatpush1.msra.mxu0 %v354
    %403 = vmatprep.subr.mxu0 0.0
    %404 = vmatpush1.msra.mxu0 %v355
    %405 = vmatprep.subr.mxu0 0.0
    %406 = vmatpush1.msra.mxu0 %v356
    %407 = vmatprep.subr.mxu0 0.0
    %408 = vmatpush1.msra.mxu0 0.0
    %409 = vmatprep.subr.mxu0 0.0
    %410 = vmatpush1.msra.mxu0 0.0
    %411 = vmatprep.subr.mxu0 0.0
    %412 = vmatpush1.msra.mxu0 0.0
    %413 = vmatprep.subr.mxu0 0.0
    %414 = vmatpush1.msra.mxu0 0.0
    %415 = vmatprep.subr.mxu0 0.0
    %416 = vmatpush1.msra.mxu0 0.0
    %417 = vmatprep.subr.mxu0 0.0
    %418 = vmatpush1.msra.mxu0 0.0
    %419 = vmatprep.subr.mxu0 0.0
    %420 = vmatpush1.msra.mxu0 0.0
    %421 = vmatprep.subr.mxu0 0.0
    %422 = vmatpush1.msra.mxu0 0.0
    %423 = vmatprep.subr.mxu0 0.0
    %424 = vmatpush1.msra.mxu0 0.0
    %425 = vmatprep.subr.mxu0 0.0
    %426 = vmatpush1.msra.mxu0 0.0
    %427 = vmatprep.subr.mxu0 0.0
    %428 = vmatpush1.msra.mxu0 0.0
    %429 = vmatprep.subr.mxu0 0.0
    %430 = vmatpush1.msra.mxu0 0.0
    %431 = vmatprep.subr.mxu0 0.0
    %432 = vmatpush1.msra.mxu0 0.0
    %433 = vmatprep.subr.mxu0 0.0
    %434 = vmatpush1.msra.mxu0 0.0
    %435 = vmatprep.subr.mxu0 0.0
    %436 = vmatpush1.msra.mxu0 0.0
    %437 = vmatprep.subr.mxu0 0.0
    %438 = vmatpush1.msra.mxu0 0.0
    %439 = vmatprep.subr.mxu0 0.0
    %440 = vmatpush1.msra.mxu0 0.0
    %441 = vmatprep.subr.mxu0 0.0
    %442 = vmatpush1.msra.mxu0 0.0
    %443 = vmatprep.subr.mxu0 0.0
    %444 = vmatpush1.msra.mxu0 0.0
    %445 = vmatprep.subr.mxu0 0.0
    %446 = vmatpush1.msra.mxu0 0.0
    %447 = vmatprep.subr.mxu0 0.0
    %448 = vmatpush1.msra.mxu0 0.0
    %449 = vmatprep.subr.mxu0 0.0
    %450 = vmatpush1.msra.mxu0 0.0
    %451 = vmatprep.subr.mxu0 0.0
    %452 = vmatpush1.msra.mxu0 0.0
    %453 = vmatprep.subr.mxu0 0.0
    %454 = vmatpush1.msra.mxu0 0.0
    %455 = vmatprep.subr.mxu0 0.0
    %456 = vmatpush1.msra.mxu0 0.0
    %457 = vmatprep.subr.mxu0 0.0
    %458 = vmatpush1.msra.mxu0 0.0
    %459 = vmatprep.subr.mxu0 0.0
    %460 = vmatpush1.msra.mxu0 0.0
    %461 = vmatprep.subr.mxu0 0.0
    %462 = vmatpush1.msra.mxu0 0.0
    %463 = vmatprep.mubr.f32.mxu0 0.0
    %464 = vmatmul.mubr.f32.gmra.mrb[0].mxu0 %v388
    %v465 = vpop.f32.mrb[0].mxu0
    %v466 = vadd.f32 %v370, %v465
    %v467 = vpop.f32.mrb[0].mxu0
    %468 = vmatprep.mubr.f32.mxu0 0.0
    %469 = vmatmul.mubr.f32.gmra.mrb[0].mxu0 %v391
    %v470 = vpop.f32.mrb[0].mxu0
    %v471 = vadd.f32 %v375, %v470
    %v472 = vpop.f32.mrb[0].mxu0
    %473 = vmatprep.mubr.f32.mxu0 0.0
    %474 = vmatmul.mubr.f32.gmra.mrb[0].mxu0 %v394
    %v475 = vpop.f32.mrb[0].mxu0
    %v476 = vadd.f32 %v380, %v475
    %v477 = vpop.f32.mrb[0].mxu0
    %478 = vmatprep.mubr.f32.mxu0 0.0
    %479 = vmatmul.mubr.f32.gmra.mrb[0].mxu0 %v397
    %v480 = vpop.f32.mrb[0].mxu0
    %v481 = vadd.f32 %v385, %v480
    %v482 = vpop.f32.mrb[0].mxu0
    %483 = vdwg.mxu0
    %v484 = vmax.f32 %v466, 0.0
    %v485 = vmax.f32 %v471, 0.0
    %v486 = vmax.f32 %v476, 0.0
    %v487 = vmax.f32 %v481, 0.0
    %s488 = scalar_lea.vmem %s3, 96
    %v489 = vld [vmem:[%s488] sm:$0xff]
    %v490 = vld [vmem:[%s488 + $0x8] sm:$0xff]
    %v491 = vld [vmem:[%s488 + $0x10] sm:$0xff]
    %v492 = vld [vmem:[%s488 + $0x18] sm:$0xff]
    %s493 = scalar_lea.vmem %s4, 96
    %v494 = vld [vmem:[%s493] sm:$0xff]
    %v495 = vld [vmem:[%s493 + $0x8] sm:$0xff]
    %v496 = vld [vmem:[%s493 + $0x10] sm:$0xff]
    %v497 = vld [vmem:[%s493 + $0x18] sm:$0xff]
    %499 = vset.pattern.permute.xlu0 0
    %500 = vperm.xlu0 %499, %v494
    %v501 = vpop.permute.xlu0 %500
    %504 = vset.pattern.permute.xlu0 0
    %505 = vperm.xlu0 %504, %v495
    %v506 = vpop.permute.xlu0 %505
    %509 = vset.pattern.permute.xlu0 0
    %510 = vperm.xlu0 %509, %v496
    %v511 = vpop.permute.xlu0 %510
    %514 = vset.pattern.permute.xlu0 0
    %515 = vperm.xlu0 %514, %v497
    %v516 = vpop.permute.xlu0 %515
    %v519 = vsel %vm124, %v489, 0
    %v522 = vsel %vm124, %v490, 0
    %v525 = vsel %vm124, %v491, 0
    %v528 = vsel %vm124, %v492, 0
    %530 = vmatprep.subr.mxu0 0.0
    %531 = vmatpush1.msra.mxu0 %v484
    %532 = vmatprep.subr.mxu0 0.0
    %533 = vmatpush1.msra.mxu0 %v485
    %534 = vmatprep.subr.mxu0 0.0
    %535 = vmatpush1.msra.mxu0 %v486
    %536 = vmatprep.subr.mxu0 0.0
    %537 = vmatpush1.msra.mxu0 %v487
    %538 = vmatprep.subr.mxu0 0.0
    %539 = vmatpush1.msra.mxu0 0.0
    %540 = vmatprep.subr.mxu0 0.0
    %541 = vmatpush1.msra.mxu0 0.0
    %542 = vmatprep.subr.mxu0 0.0
    %543 = vmatpush1.msra.mxu0 0.0
    %544 = vmatprep.subr.mxu0 0.0
    %545 = vmatpush1.msra.mxu0 0.0
    %546 = vmatprep.subr.mxu0 0.0
    %547 = vmatpush1.msra.mxu0 0.0
    %548 = vmatprep.subr.mxu0 0.0
    %549 = vmatpush1.msra.mxu0 0.0
    %550 = vmatprep.subr.mxu0 0.0
    %551 = vmatpush1.msra.mxu0 0.0
    %552 = vmatprep.subr.mxu0 0.0
    %553 = vmatpush1.msra.mxu0 0.0
    %554 = vmatprep.subr.mxu0 0.0
    %555 = vmatpush1.msra.mxu0 0.0
    %556 = vmatprep.subr.mxu0 0.0
    %557 = vmatpush1.msra.mxu0 0.0
    %558 = vmatprep.subr.mxu0 0.0
    %559 = vmatpush1.msra.mxu0 0.0
    %560 = vmatprep.subr.mxu0 0.0
    %561 = vmatpush1.msra.mxu0 0.0
    %562 = vmatprep.subr.mxu0 0.0
    %563 = vmatpush1.msra.mxu0 0.0
    %564 = vmatprep.subr.mxu0 0.0
    %565 = vmatpush1.msra.mxu0 0.0
    %566 = vmatprep.subr.mxu0 0.0
    %567 = vmatpush1.msra.mxu0 0.0
    %568 = vmatprep.subr.mxu0 0.0
    %569 = vmatpush1.msra.mxu0 0.0
    %570 = vmatprep.subr.mxu0 0.0
    %571 = vmatpush1.msra.mxu0 0.0
    %572 = vmatprep.subr.mxu0 0.0
    %573 = vmatpush1.msra.mxu0 0.0
    %574 = vmatprep.subr.mxu0 0.0
    %575 = vmatpush1.msra.mxu0 0.0
    %576 = vmatprep.subr.mxu0 0.0
    %577 = vmatpush1.msra.mxu0 0.0
    %578 = vmatprep.subr.mxu0 0.0
    %579 = vmatpush1.msra.mxu0 0.0
    %580 = vmatprep.subr.mxu0 0.0
    %581 = vmatpush1.msra.mxu0 0.0
    %582 = vmatprep.subr.mxu0 0.0
    %583 = vmatpush1.msra.mxu0 0.0
    %584 = vmatprep.subr.mxu0 0.0
    %585 = vmatpush1.msra.mxu0 0.0
    %586 = vmatprep.subr.mxu0 0.0
    %587 = vmatpush1.msra.mxu0 0.0
    %588 = vmatprep.subr.mxu0 0.0
    %589 = vmatpush1.msra.mxu0 0.0
    %590 = vmatprep.subr.mxu0 0.0
    %591 = vmatpush1.msra.mxu0 0.0
    %592 = vmatprep.subr.mxu0 0.0
    %593 = vmatpush1.msra.mxu0 0.0
    %594 = vmatprep.mubr.f32.mxu0 0.0
    %595 = vmatmul.mubr.f32.gmra.mrb[0].mxu0 %v519
    %v596 = vpop.f32.mrb[0].mxu0
    %v597 = vadd.f32 %v501, %v596
    %v598 = vpop.f32.mrb[0].mxu0
    %599 = vmatprep.mubr.f32.mxu0 0.0
    %600 = vmatmul.mubr.f32.gmra.mrb[0].mxu0 %v522
    %v601 = vpop.f32.mrb[0].mxu0
    %v602 = vadd.f32 %v506, %v601
    %v603 = vpop.f32.mrb[0].mxu0
    %604 = vmatprep.mubr.f32.mxu0 0.0
    %605 = vmatmul.mubr.f32.gmra.mrb[0].mxu0 %v525
    %v606 = vpop.f32.mrb[0].mxu0
    %v607 = vadd.f32 %v511, %v606
    %v608 = vpop.f32.mrb[0].mxu0
    %609 = vmatprep.mubr.f32.mxu0 0.0
    %610 = vmatmul.mubr.f32.gmra.mrb[0].mxu0 %v528
    %v611 = vpop.f32.mrb[0].mxu0
    %v612 = vadd.f32 %v516, %v611
    %v613 = vpop.f32.mrb[0].mxu0
    %614 = vdwg.mxu0
    %v615 = vmax.f32 %v597, 0.0
    %v616 = vmax.f32 %v602, 0.0
    %v617 = vmax.f32 %v607, 0.0
    %v618 = vmax.f32 %v612, 0.0
    %v619 = vld [vmem:[%s5] sm:$0x1]
    %v620 = vld [vmem:[#allocation2] sm:$0x1]
    %622 = vset.pattern.permute.xlu0 0
    %623 = vperm.xlu0 %622, %v620
    %v624 = vpop.permute.xlu0 %623
    %v626 = vlaneseq
    %v627 = vshrl.u32 %v626, 7
    %v628 = vsub.s32 0, %v627
    %v629 = vrot.slane %v624, %v628
    %v631 = vsel %vm124, %v619, 0
    %633 = vmatprep.subr.mxu0 0.0
    %634 = vmatpush1.msra.mxu0 %v615
    %635 = vmatprep.subr.mxu0 0.0
    %636 = vmatpush1.msra.mxu0 %v616
    %637 = vmatprep.subr.mxu0 0.0
    %638 = vmatpush1.msra.mxu0 %v617
    %639 = vmatprep.subr.mxu0 0.0
    %640 = vmatpush1.msra.mxu0 %v618
    %641 = vmatprep.subr.mxu0 0.0
    %642 = vmatpush1.msra.mxu0 0.0
    %643 = vmatprep.subr.mxu0 0.0
    %644 = vmatpush1.msra.mxu0 0.0
    %645 = vmatprep.subr.mxu0 0.0
    %646 = vmatpush1.msra.mxu0 0.0
    %647 = vmatprep.subr.mxu0 0.0
    %648 = vmatpush1.msra.mxu0 0.0
    %649 = vmatprep.subr.mxu0 0.0
    %650 = vmatpush1.msra.mxu0 0.0
    %651 = vmatprep.subr.mxu0 0.0
    %652 = vmatpush1.msra.mxu0 0.0
    %653 = vmatprep.subr.mxu0 0.0
    %654 = vmatpush1.msra.mxu0 0.0
    %655 = vmatprep.subr.mxu0 0.0
    %656 = vmatpush1.msra.mxu0 0.0
    %657 = vmatprep.subr.mxu0 0.0
    %658 = vmatpush1.msra.mxu0 0.0
    %659 = vmatprep.subr.mxu0 0.0
    %660 = vmatpush1.msra.mxu0 0.0
    %661 = vmatprep.subr.mxu0 0.0
    %662 = vmatpush1.msra.mxu0 0.0
    %663 = vmatprep.subr.mxu0 0.0
    %664 = vmatpush1.msra.mxu0 0.0
    %665 = vmatprep.subr.mxu0 0.0
    %666 = vmatpush1.msra.mxu0 0.0
    %667 = vmatprep.subr.mxu0 0.0
    %668 = vmatpush1.msra.mxu0 0.0
    %669 = vmatprep.subr.mxu0 0.0
    %670 = vmatpush1.msra.mxu0 0.0
    %671 = vmatprep.subr.mxu0 0.0
    %672 = vmatpush1.msra.mxu0 0.0
    %673 = vmatprep.subr.mxu0 0.0
    %674 = vmatpush1.msra.mxu0 0.0
    %675 = vmatprep.subr.mxu0 0.0
    %676 = vmatpush1.msra.mxu0 0.0
    %677 = vmatprep.subr.mxu0 0.0
    %678 = vmatpush1.msra.mxu0 0.0
    %679 = vmatprep.subr.mxu0 0.0
    %680 = vmatpush1.msra.mxu0 0.0
    %681 = vmatprep.subr.mxu0 0.0
    %682 = vmatpush1.msra.mxu0 0.0
    %683 = vmatprep.subr.mxu0 0.0
    %684 = vmatpush1.msra.mxu0 0.0
    %685 = vmatprep.subr.mxu0 0.0
    %686 = vmatpush1.msra.mxu0 0.0
    %687 = vmatprep.subr.mxu0 0.0
    %688 = vmatpush1.msra.mxu0 0.0
    %689 = vmatprep.subr.mxu0 0.0
    %690 = vmatpush1.msra.mxu0 0.0
    %691 = vmatprep.subr.mxu0 0.0
    %692 = vmatpush1.msra.mxu0 0.0
    %693 = vmatprep.subr.mxu0 0.0
    %694 = vmatpush1.msra.mxu0 0.0
    %695 = vmatprep.subr.mxu0 0.0
    %696 = vmatpush1.msra.mxu0 0.0
    %697 = vmatprep.mubr.f32.mxu0 0.0
    %698 = vmatmul.mubr.f32.gmra.mrb[0].mxu0 %v631
    %v699 = vpop.f32.mrb[0].mxu0
    %v700 = vadd.f32 %v629, %v699
    %v701 = vpop.f32.mrb[0].mxu0
    %702 = vdwg.mxu0
    %703 = vst [vmem:[#allocation3] sm:$0x1] %v700
    // Predicated region
    $region30: #{_nn_forward_impl.1} parent=1 // pred_check
      _
    $region31: #{_nn_forward_impl.1} parent=1 // pred_check_branch
      %705 = sbr.rel (0) target = $region33
    $region32: #{_nn_forward_impl.1} parent=1 // pred_region
      %s707 = ssub.s32 16, 16
      %708 = vsyncadd [#allocation4], %s707
      %s710 = sshll.u32 [#allocation3], 4
      %s711 = int_to_ptr.vmem [resolvable:$true] %s710
      %713 = dma.vmem_to_hbm [thread:$0]  %s711, 16, %s7, [#allocation4]
    $region33: #{_nn_forward_impl.1} parent=1 // pred_fallthru
      _
    // Predicated region
    $region34: #{_nn_forward_impl.1} parent=1 // pred_check
      _
    $region35: #{_nn_forward_impl.1} parent=1 // pred_check_branch
      %715 = sbr.rel (0) target = $region37
    $region36: #{_nn_forward_impl.1} parent=1 // pred_region
      %716 = dma.done [#allocation4], 16
    $region37: #{_nn_forward_impl.1} parent=1 // pred_fallthru
      _
    %717 = vsyncpa [#allocation4], 1

</llo_original>
